<compile_context>
chip_gen: v7x
topology: tpu7x:2x2x1
jax: 0.10.0
libtpu: 0.0.40
codegen_flags: <defaults>
</compile_context>

<pallas_src>
import functools

import jax
import jax.numpy as jnp
from jax.experimental import pallas as pl
from jax.experimental.pallas import tpu as pltpu

_LANE = 128
_SUBLANE = 8


def _round_up(x, m):
    return (x + m - 1) // m * m


def _choose_block_m(n, requested, min_tiles=4):
    """Pick the batch tile.

    Always a multiple of 8; a multiple of 128 (lane-dense transposed store)
    once the batch is big enough.  For large N aim for >= `min_tiles` tiles so
    v7x's two TensorCores both get work on the 'parallel' axis; cap at
    `requested` (default 1024) to amortize the ~0.35 us per-grid-step overhead.
    """
    n = int(n)
    n_up = _round_up(max(n, 1), _SUBLANE)
    if n_up <= _LANE:
        return n_up                                   # tiny batch: one small aligned tile
    requested = max(_LANE, _round_up(int(requested), _LANE))
    target = max(_LANE, _round_up(pl.cdiv(n, min_tiles), _LANE))
    return min(requested, target, _round_up(n, _LANE))


def _mlp_kernel(num_layers, lane_dense_out, compute_dtype, x_ref, *refs):
    """refs = (w1, b1, ..., wL, bL, out_ref).

    x_ref : (block_m, D) activation tile in the caller's dtype (cast in-kernel).
    w_l   : hidden layers pre-transposed (in_p, out_p), compute_dtype;
            last layer with lane_dense_out kept in torch layout (1, in_p).
    b_l   : (1, out_p) float32 (bias/ReLU/sigmoid tail stays f32 -> v5e safe).
    out   : lane_dense_out -> (1, 1, block_m)   else (block_m, out_dim).
    """
    out_ref = refs[-1]
    params = refs[:-1]

    # Cast to the MXU input dtype in-kernel (avoids a host-side HBM pass).
    h = x_ref[...].astype(compute_dtype)

    # Hidden layers: MXU matmul with f32 accumulation; bias/ReLU in f32.
    for l in range(num_layers - 1):
        w = params[2 * l][...]
        b = params[2 * l + 1][...]
        h = jnp.dot(h, w, preferred_element_type=jnp.float32) + b
        h = jnp.maximum(h, 0.0).astype(compute_dtype)
        # Dropout is identity at inference (training=False).
        # TODO(synk): training-mode dropout would use pltpu.prng_seed +
        # pltpu.prng_random_bits to build the keep mask in-kernel.

    w_last = params[2 * (num_layers - 1)][...]
    b_last = params[2 * (num_layers - 1) + 1][...]

    if lane_dense_out:
        # out_dim == 1: compute the logits already transposed so the store is
        # lane-dense:  logits^T = W_last(1,K) . h(block_m,K) contracted over K.
        logits_t = jax.lax.dot_general(
            w_last, h, (((1,), (1,)), ((), ())),
            preferred_element_type=jnp.float32)               # (1, block_m)
        y = jax.nn.sigmoid(logits_t + b_last)                 # f32
        out_ref[...] = y.reshape(out_ref.shape).astype(out_ref.dtype)
    else:
        logits = jnp.dot(h, w_last, preferred_element_type=jnp.float32) + b_last
        out_ref[...] = jax.nn.sigmoid(logits).astype(out_ref.dtype)


def link_predictor_forward(x, weights, biases, *, block_m=1024, compute_dtype=None):
    """x: [N, input_dim]; weights[i]: torch layout (out_i, in_i); biases[i]: (out_i,).

    compute_dtype: MXU input dtype for x / weights (f32 default; jnp.bfloat16
    recommended on all generations — the elementwise tail stays f32).
    """
    N, D = x.shape
    num_layers = len(weights)
    out_dim = int(weights[-1].shape[0])
    out_dtype = x.dtype
    if compute_dtype is None:
        compute_dtype = x.dtype

    # ---- feature dims: input D and output out_dim stay UNPADDED; only the
    #      hidden activation widths are padded to 128 lanes (MXU-aligned) ----
    dims_true = [D] + [int(w.shape[0]) for w in weights]
    pdims = list(dims_true)
    for l in range(1, num_layers):          # hidden widths only
        pdims[l] = _round_up(dims_true[l], _LANE)
    lane_dense_out = (out_dim == 1)

    ws, bs = [], []
    for l, (w, b) in enumerate(zip(weights, biases)):
        w = jnp.asarray(w, jnp.float32)
        b = jnp.asarray(b, jnp.float32)
        in_t, out_t = int(w.shape[1]), int(w.shape[0])
        in_p, out_p = pdims[l], pdims[l + 1]
        last = (l == num_layers - 1)
        if last and lane_dense_out:
            # keep torch layout (1, in_p) for the transposed last matmul
            w_p = jnp.zeros((out_p, in_p), jnp.float32).at[:out_t, :in_t].set(w)
        else:
            # pre-transpose to (in_p, out_p); out_p is unpadded for the last layer
            w_p = jnp.zeros((in_p, out_p), jnp.float32).at[:in_t, :out_t].set(w.T)
        b_p = jnp.zeros((1, out_p), jnp.float32).at[:, :out_t].set(b.reshape(1, -1))
        ws.append(w_p.astype(compute_dtype))   # weights may be bf16 (MXU input)
        bs.append(b_p)                         # biases stay f32 (post-accum add)

    # ---- batch tiling: NO host-side padding of x; grid = cdiv(N, block_m).
    #      The last tile's OOB rows hold unspecified data (sliced off below). ----
    block_m = _choose_block_m(N, block_m)
    num_tiles = pl.cdiv(N, block_m)

    # ---- specs ----
    x_spec = pl.BlockSpec((block_m, D), lambda i: (i, 0))   # last dim = full D: legal
    # Grid-invariant params: whole-array VMEM operands (single buffer, one copy).
    param_specs = [pl.BlockSpec(memory_space=pltpu.MemorySpace.VMEM)
                   for _ in range(2 * num_layers)]

    if lane_dense_out:
        out_shape = jax.ShapeDtypeStruct((num_tiles, 1, block_m), out_dtype)
        out_spec = pl.BlockSpec((1, 1, block_m), lambda i: (i, 0, 0))
        out_block_elems = block_m
    else:
        out_shape = jax.ShapeDtypeStruct((num_tiles * block_m, out_dim), out_dtype)
        out_spec = pl.BlockSpec((block_m, out_dim), lambda i: (i, 0))
        out_block_elems = block_m * out_dim

    # ---- tight VMEM budget (actual footprint is a few MiB) ----
    x_item = jnp.dtype(x.dtype).itemsize
    o_item = jnp.dtype(out_dtype).itemsize
    param_bytes = sum(int(a.size) * a.dtype.itemsize for a in ws + bs)
    act_width = max(pdims[1:]) if num_layers > 0 else D
    vmem_est = (2 * block_m * D * x_item            # double-buffered x tiles
                + 2 * out_block_elems * o_item      # double-buffered out tiles
                + param_bytes                       # single resident param copy
                + 3 * block_m * act_width * 4)      # f32 intermediates
    vmem_limit = int(min(48 << 20, max(8 << 20, 2 * vmem_est)))

    # ---- cost estimate from TRUE (unpadded) dims and true N ----
    c_item = jnp.dtype(compute_dtype).itemsize
    flops = 2 * N * sum(dims_true[l] * dims_true[l + 1] for l in range(num_layers))
    true_param_bytes = sum(int(jnp.asarray(w).size) * c_item +
                           int(jnp.asarray(b).size) * 4
                           for w, b in zip(weights, biases))
    bytes_accessed = N * D * x_item + true_param_bytes + N * out_dim * o_item
    cost = pl.CostEstimate(flops=flops, transcendentals=N * out_dim,
                           bytes_accessed=bytes_accessed)

    kernel = functools.partial(_mlp_kernel, num_layers, lane_dense_out, compute_dtype)
    flat_params = [a for pair in zip(ws, bs) for a in pair]

    out = pl.pallas_call(
        kernel,
        out_shape=out_shape,
        grid_spec=pltpu.PrefetchScalarGridSpec(
            num_scalar_prefetch=0,
            grid=(num_tiles,),
            in_specs=[x_spec] + param_specs,
            out_specs=out_spec,
        ),
        compiler_params=pltpu.CompilerParams(
            dimension_semantics=("parallel",),
            vmem_limit_bytes=vmem_limit,
        ),
        cost_estimate=cost,
    )(x, *flat_params)

    if lane_dense_out:
        return out.reshape(num_tiles * block_m)[:N].reshape(N, 1)
    return out[:N]


def init_link_predictor_params(key, input_dim, hidden_dim, output_dim, num_layers):
    """Deterministic init mimicking torch.nn.Linear default (uniform +/- 1/sqrt(fan_in))."""
    dims = [input_dim] + [hidden_dim] * (num_layers - 1) + [output_dim]
    weights, biases = [], []
    for l in range(num_layers):
        fan_in, fan_out = dims[l], dims[l + 1]
        key, kw, kb = jax.random.split(key, 3)
        bound = 1.0 / jnp.sqrt(jnp.float32(fan_in))
        w = jax.random.uniform(kw, (fan_out, fan_in), jnp.float32, -bound, bound)
        b = jax.random.uniform(kb, (fan_out,), jnp.float32, -bound, bound)
        weights.append(w)
        biases.append(b)
    return weights, biases


def _reference_forward(x, weights, biases):
    h = x
    for l in range(len(weights)):
        h = h @ weights[l].T + biases[l]
        if l < len(weights) - 1:
            h = jnp.maximum(h, 0.0)
    return jax.nn.sigmoid(h)


if __name__ == "__main__":
    # Config matching the PyTorch module: LinkPredictor(32, 32, 1, 3, dropout=0.5)
    input_dim, hidden_dim, output_dim, num_layers = 32, 32, 1, 3
    dropout = 0.5  # identity at inference
    batch = 16

    key = jax.random.PRNGKey(0)
    key, kx = jax.random.split(key)
    x = jax.random.normal(kx, (batch, input_dim), jnp.float32)

    weights, biases = init_link_predictor_params(
        key, input_dim, hidden_dim, output_dim, num_layers)
    ref = _reference_forward(x, weights, biases)

    # float32 compute path — matches the JAX reference tightly.
    out = jax.block_until_ready(link_predictor_forward(x, weights, biases))
    assert out.shape == (batch, output_dim)
    assert jnp.allclose(out, ref, atol=1e-5, rtol=1e-5), "f32 mismatch vs JAX reference"

    # bfloat16 MXU-input path (opt-in; halves x/weight HBM reads, f32 tail).
    out_bf16 = jax.block_until_ready(
        link_predictor_forward(x, weights, biases, compute_dtype=jnp.bfloat16))
    assert out_bf16.shape == (batch, output_dim)
    assert jnp.allclose(out_bf16, ref, atol=5e-2, rtol=0), "bf16 mismatch vs JAX reference"

    # Generalized path: out_dim > 1 with an unpadded output feature dim.
    w3, b3 = init_link_predictor_params(
        jax.random.PRNGKey(1), input_dim, hidden_dim, 3, num_layers)
    ref3 = _reference_forward(x, w3, b3)
    out3 = jax.block_until_ready(link_predictor_forward(x, w3, b3))
    assert out3.shape == (batch, 3)
    assert jnp.allclose(out3, ref3, atol=1e-5, rtol=1e-5), "out_dim=3 mismatch"

    print("KERNEL_OK")
</pallas_src>

<mosaic_0001>
module attributes {stable_mosaic.version = 11 : i64} {
  func.func @_mlp_kernel(%arg0: i32, %arg1: memref<16x32xf32, #tpu.memory_space<vmem>>, %arg2: memref<32x128xf32, #tpu.memory_space<vmem>>, %arg3: memref<1x128xf32, #tpu.memory_space<vmem>>, %arg4: memref<128x128xf32, #tpu.memory_space<vmem>>, %arg5: memref<1x128xf32, #tpu.memory_space<vmem>>, %arg6: memref<1x128xf32, #tpu.memory_space<vmem>>, %arg7: memref<1x1xf32, #tpu.memory_space<vmem>>, %arg8: memref<1x1x16xf32, #tpu.memory_space<vmem>>) attributes {dimension_semantics = [#tpu.dimension_semantics<parallel>], iteration_bounds = array<i64: 1>, scalar_prefetch = 0 : i64, scratch_operands = 0 : i64, tpu.core_type = #tpu.core_type<tc>, window_params = [{transform_indices = @transform_0, window_bounds = array<i64: 16, 32>}, {pipeline_mode = #tpu.pipeline_mode<synchronous>, transform_indices = @transform_1, window_bounds = array<i64: 32, 128>}, {pipeline_mode = #tpu.pipeline_mode<synchronous>, transform_indices = @transform_2, window_bounds = array<i64: 1, 128>}, {pipeline_mode = #tpu.pipeline_mode<synchronous>, transform_indices = @transform_3, window_bounds = array<i64: 128, 128>}, {pipeline_mode = #tpu.pipeline_mode<synchronous>, transform_indices = @transform_4, window_bounds = array<i64: 1, 128>}, {pipeline_mode = #tpu.pipeline_mode<synchronous>, transform_indices = @transform_5, window_bounds = array<i64: 1, 128>}, {pipeline_mode = #tpu.pipeline_mode<synchronous>, transform_indices = @transform_6, window_bounds = array<i64: 1, 1>}, {transform_indices = @transform_7, window_bounds = array<i64: 1, 1, 16>}]} {
    %c0 = arith.constant 0 : index
    %c0_0 = arith.constant 0 : index
    %0 = vector.load %arg1[%c0, %c0_0] : memref<16x32xf32, #tpu.memory_space<vmem>>, vector<16x32xf32>
    %c0_1 = arith.constant 0 : index
    %c0_2 = arith.constant 0 : index
    %1 = vector.load %arg2[%c0_1, %c0_2] : memref<32x128xf32, #tpu.memory_space<vmem>>, vector<32x128xf32>
    %c0_3 = arith.constant 0 : index
    %c0_4 = arith.constant 0 : index
    %2 = vector.load %arg3[%c0_3, %c0_4] : memref<1x128xf32, #tpu.memory_space<vmem>>, vector<1x128xf32>
    %cst = arith.constant dense<0.000000e+00> : vector<16x128xf32>
    %3 = tpu.matmul %0, %1, %cst {dimension_numbers = #tpu.dot_dimension_numbers<[1], [0], [0], [1], [0, 0, 1, 1], [], []>} : vector<16x32xf32>, vector<32x128xf32>, vector<16x128xf32> -> vector<16x128xf32>
    %4 = vector.broadcast %2 : vector<1x128xf32> to vector<16x128xf32>
    %5 = arith.addf %3, %4 : vector<16x128xf32>
    %cst_5 = arith.constant 0.000000e+00 : f32
    %6 = vector.broadcast %cst_5 : f32 to vector<16x128xf32>
    %7 = arith.maximumf %5, %6 : vector<16x128xf32>
    %c0_6 = arith.constant 0 : index
    %c0_7 = arith.constant 0 : index
    %8 = vector.load %arg4[%c0_6, %c0_7] : memref<128x128xf32, #tpu.memory_space<vmem>>, vector<128x128xf32>
    %c0_8 = arith.constant 0 : index
    %c0_9 = arith.constant 0 : index
    %9 = vector.load %arg5[%c0_8, %c0_9] : memref<1x128xf32, #tpu.memory_space<vmem>>, vector<1x128xf32>
    %cst_10 = arith.constant dense<0.000000e+00> : vector<16x128xf32>
    %10 = tpu.matmul %7, %8, %cst_10 {dimension_numbers = #tpu.dot_dimension_numbers<[1], [0], [0], [1], [0, 0, 1, 1], [], []>} : vector<16x128xf32>, vector<128x128xf32>, vector<16x128xf32> -> vector<16x128xf32>
    %11 = vector.broadcast %9 : vector<1x128xf32> to vector<16x128xf32>
    %12 = arith.addf %10, %11 : vector<16x128xf32>
    %cst_11 = arith.constant 0.000000e+00 : f32
    %13 = vector.broadcast %cst_11 : f32 to vector<16x128xf32>
    %14 = arith.maximumf %12, %13 : vector<16x128xf32>
    %c0_12 = arith.constant 0 : index
    %c0_13 = arith.constant 0 : index
    %15 = vector.load %arg6[%c0_12, %c0_13] : memref<1x128xf32, #tpu.memory_space<vmem>>, vector<1x128xf32>
    %c0_14 = arith.constant 0 : index
    %c0_15 = arith.constant 0 : index
    %16 = vector.load %arg7[%c0_14, %c0_15] : memref<1x1xf32, #tpu.memory_space<vmem>>, vector<1x1xf32>
    %cst_16 = arith.constant dense<0.000000e+00> : vector<1x16xf32>
    %17 = tpu.matmul %15, %14, %cst_16 {dimension_numbers = #tpu.dot_dimension_numbers<[1], [1], [0], [0], [0, 0, 1, 0], [], []>} : vector<1x128xf32>, vector<16x128xf32>, vector<1x16xf32> -> vector<1x16xf32>
    %18 = vector.broadcast %16 : vector<1x1xf32> to vector<1x16xf32>
    %19 = arith.addf %17, %18 : vector<1x16xf32>
    %20 = arith.negf %19 : vector<1x16xf32>
    %21 = math.exp %20 : vector<1x16xf32>
    %cst_17 = arith.constant 1.000000e+00 : f32
    %22 = vector.broadcast %cst_17 : f32 to vector<1x16xf32>
    %23 = arith.addf %22, %21 : vector<1x16xf32>
    %24 = arith.divf %22, %23 : vector<1x16xf32>
    %25 = vector.shape_cast %24 : vector<1x16xf32> to vector<1x1x16xf32>
    %c0_18 = arith.constant 0 : index
    %c0_19 = arith.constant 0 : index
    %c0_20 = arith.constant 0 : index
    %26 = vector.load %arg8[%c0_18, %c0_19, %c0_20] : memref<1x1x16xf32, #tpu.memory_space<vmem>>, vector<1x1x16xf32>
    tpu.vector_store %arg8[%c0_18, %c0_19, %c0_20], %25 {strides = array<i32>} : memref<1x1x16xf32, #tpu.memory_space<vmem>>, vector<1x1x16xf32>,
    return
  }
  func.func @transform_0(%arg0: i32) -> (i32, i32) {
    %c0_i32 = arith.constant 0 : i32
    %c0_i32_0 = arith.constant 0 : i32
    return %arg0, %c0_i32 : i32, i32
  }
  func.func @transform_1(%arg0: i32) -> (i32, i32) {
    %c0_i32 = arith.constant 0 : i32
    %c0_i32_0 = arith.constant 0 : i32
    %c0_i32_1 = arith.constant 0 : i32
    return %c0_i32, %c0_i32_0 : i32, i32
  }
  func.func @transform_2(%arg0: i32) -> (i32, i32) {
    %c0_i32 = arith.constant 0 : i32
    %c0_i32_0 = arith.constant 0 : i32
    %c0_i32_1 = arith.constant 0 : i32
    return %c0_i32, %c0_i32_0 : i32, i32
  }
  func.func @transform_3(%arg0: i32) -> (i32, i32) {
    %c0_i32 = arith.constant 0 : i32
    %c0_i32_0 = arith.constant 0 : i32
    %c0_i32_1 = arith.constant 0 : i32
    return %c0_i32, %c0_i32_0 : i32, i32
  }
  func.func @transform_4(%arg0: i32) -> (i32, i32) {
    %c0_i32 = arith.constant 0 : i32
    %c0_i32_0 = arith.constant 0 : i32
    %c0_i32_1 = arith.constant 0 : i32
    return %c0_i32, %c0_i32_0 : i32, i32
  }
  func.func @transform_5(%arg0: i32) -> (i32, i32) {
    %c0_i32 = arith.constant 0 : i32
    %c0_i32_0 = arith.constant 0 : i32
    %c0_i32_1 = arith.constant 0 : i32
    return %c0_i32, %c0_i32_0 : i32, i32
  }
  func.func @transform_6(%arg0: i32) -> (i32, i32) {
    %c0_i32 = arith.constant 0 : i32
    %c0_i32_0 = arith.constant 0 : i32
    %c0_i32_1 = arith.constant 0 : i32
    return %c0_i32, %c0_i32_0 : i32, i32
  }
  func.func @transform_7(%arg0: i32) -> (i32, i32, i32) {
    %c0_i32 = arith.constant 0 : i32
    %c0_i32_0 = arith.constant 0 : i32
    %c0_i32_1 = arith.constant 0 : i32
    return %arg0, %c0_i32, %c0_i32_0 : i32, i32, i32
  }
}

</mosaic_0001>

<llo_original>
// kernel: tpu_custom_call.1
$region0: #{tpu_custom_call.1}
  #allocation0 [shape = 'u32[]', space=smem, size = 0x4, offset = 0x4, fixed_abs, tag = 'smem constant byte address 0x4 - core index']
  #allocation1 [shape = 'u32[144,128]{1,0:T(1,128)}', space=vmem, size = 0x12000, scoped, tag = 'internal scratch']
  #allocation2 [shape = 'f32[1,1]{1,0:T(1,128)S(1)}', space=vmem, size = 0x200, scoped, tag = 'scoped memory for tpu_custom_call.1']
  %s0 = inlined_call_operand.hbm [shape: f32[16,32], index: 0, kind: input, shape index: {}]
  %s1 = inlined_call_operand.hbm [shape: f32[32,128], index: 1, kind: input, shape index: {}]
  %s2 = inlined_call_operand.vmem [shape: f32[1,128], index: 2, kind: input, shape index: {}]
  %s3 = inlined_call_operand.hbm [shape: f32[128,128], index: 3, kind: input, shape index: {}]
  %s4 = inlined_call_operand.vmem [shape: f32[1,128], index: 4, kind: input, shape index: {}]
  %s5 = inlined_call_operand.vmem [shape: f32[1,128], index: 5, kind: input, shape index: {}]
  %s6 = inlined_call_operand.<no memory space> [shape: f32[1,1], index: 6, kind: input, shape index: {}]
  %s7 = inlined_call_operand.hbm [shape: f32[1,1,16], index: 7, kind: output, shape index: {}]
  %s8 = sld [smem:[#allocation0]]
  $region50: #{tpu_custom_call.1} parent=0
    _
  %s10 = ssub.s32 1, %s8
  %s11 = scalar_select 0, %s10, %s8
  %v12 = vstv %s6
  %13 = vst [vmem:[#allocation2] sm:$0x1] %v12
  $region1: #{tpu_custom_call.1} parent=0
    #allocation3 [shape = 'u8[8192]{0}', space=vmem, size = 0x2000, scoped, tag = 'input window, operand 0, single buffered']
    #allocation4 [shape = 's32[1]{0}', space=sflag, size = 0x4, scoped, tag = 'scoped memory for tpu_custom_call.1']
    #allocation5 [shape = 's32[1]{0}', space=sflag, size = 0x4, scoped, tag = 'scoped memory for tpu_custom_call.1']
    #allocation6 [shape = 'u8[16384]{0}', space=vmem, size = 0x4000, scoped, tag = 'input window, operand 1, single buffered']
    #allocation7 [shape = 's32[1]{0}', space=sflag, size = 0x4, scoped, tag = 'scoped memory for tpu_custom_call.1']
    #allocation8 [shape = 'u8[65536]{0}', space=vmem, size = 0x10000, scoped, tag = 'input window, operand 3, single buffered']
    #allocation9 [shape = 'u8[512]{0}', space=vmem, size = 0x400, scoped, tag = 'output window, operand 0, single buffered']
    %14 = vsyncpa [#allocation4], 0
    %15 = vsyncpa [#allocation7], 0
    %16 = vsyncpa [#allocation5], 0
    // Predicated region
    $region2: #{tpu_custom_call.1} parent=1 // pred_check
      _
    $region3: #{tpu_custom_call.1} parent=1 // pred_check_branch
      %18 = sbr.rel (0) target = $region5
    $region4: #{tpu_custom_call.1} parent=1 // pred_region
      %s20 = ssub.s32 256, 256
      %21 = vsyncadd [#allocation4], %s20
      %s22 = sshll.u32 [#allocation3], 4
      %s23 = int_to_ptr.vmem [resolvable:$true] %s22
      %28 = dma.hbm_to_vmem [thread:$0]  %s0, 256, %s23, [#allocation4], 128, 128, 8
    $region5: #{tpu_custom_call.1} parent=1 // pred_fallthru
      _
    // Predicated region
    $region6: #{tpu_custom_call.1} parent=1 // pred_check
      _
    $region7: #{tpu_custom_call.1} parent=1 // pred_check_branch
      %30 = sbr.rel (0) target = $region9
    $region8: #{tpu_custom_call.1} parent=1 // pred_region
      %s32 = ssub.s32 512, 512
      %33 = vsyncadd [#allocation7], %s32
      %s34 = sshll.u32 [#allocation6], 4
      %s35 = int_to_ptr.vmem [resolvable:$true] %s34
      %40 = dma.hbm_to_vmem [thread:$0]  %s1, 512, %s35, [#allocation7], 128, 128, 8
    $region9: #{tpu_custom_call.1} parent=1 // pred_fallthru
      _
    // Predicated region
    $region10: #{tpu_custom_call.1} parent=1 // pred_check
      _
    $region11: #{tpu_custom_call.1} parent=1 // pred_check_branch
      %42 = sbr.rel (0) target = $region13
    $region12: #{tpu_custom_call.1} parent=1 // pred_region
      _
    $region13: #{tpu_custom_call.1} parent=1 // pred_fallthru
      _
    // Predicated region
    $region14: #{tpu_custom_call.1} parent=1 // pred_check
      _
    $region15: #{tpu_custom_call.1} parent=1 // pred_check_branch
      %44 = sbr.rel (0) target = $region17
    $region16: #{tpu_custom_call.1} parent=1 // pred_region
      %s46 = ssub.s32 2048, 2048
      %47 = vsyncadd [#allocation7], %s46
      %s48 = sshll.u32 [#allocation8], 4
      %s49 = int_to_ptr.vmem [resolvable:$true] %s48
      %54 = dma.hbm_to_vmem [thread:$0]  %s3, 2048, %s49, [#allocation7], 128, 128, 8
    $region17: #{tpu_custom_call.1} parent=1 // pred_fallthru
      _
    // Predicated region
    $region18: #{tpu_custom_call.1} parent=1 // pred_check
      _
    $region19: #{tpu_custom_call.1} parent=1 // pred_check_branch
      %56 = sbr.rel (0) target = $region21
    $region20: #{tpu_custom_call.1} parent=1 // pred_region
      _
    $region21: #{tpu_custom_call.1} parent=1 // pred_fallthru
      _
    // Predicated region
    $region22: #{tpu_custom_call.1} parent=1 // pred_check
      _
    $region23: #{tpu_custom_call.1} parent=1 // pred_check_branch
      %58 = sbr.rel (0) target = $region25
    $region24: #{tpu_custom_call.1} parent=1 // pred_region
      _
    $region25: #{tpu_custom_call.1} parent=1 // pred_fallthru
      _
    // Predicated region
    $region26: #{tpu_custom_call.1} parent=1 // pred_check
      _
    $region27: #{tpu_custom_call.1} parent=1 // pred_check_branch
      %60 = sbr.rel (0) target = $region29
    $region28: #{tpu_custom_call.1} parent=1 // pred_region
      _
    $region29: #{tpu_custom_call.1} parent=1 // pred_fallthru
      _
    // Predicated region
    $region30: #{tpu_custom_call.1} parent=1 // pred_check
      _
    $region31: #{tpu_custom_call.1} parent=1 // pred_check_branch
      %62 = sbr.rel (0) target = $region33
    $region32: #{tpu_custom_call.1} parent=1 // pred_region
      %63 = dma.done [#allocation4], 256
    $region33: #{tpu_custom_call.1} parent=1 // pred_fallthru
      _
    // Predicated region
    $region34: #{tpu_custom_call.1} parent=1 // pred_check
      _
    $region35: #{tpu_custom_call.1} parent=1 // pred_check_branch
      %65 = sbr.rel (0) target = $region37
    $region36: #{tpu_custom_call.1} parent=1 // pred_region
      %66 = dma.done [#allocation7], 512
    $region37: #{tpu_custom_call.1} parent=1 // pred_fallthru
      _
    // Predicated region
    $region38: #{tpu_custom_call.1} parent=1 // pred_check
      _
    $region39: #{tpu_custom_call.1} parent=1 // pred_check_branch
      %68 = sbr.rel (0) target = $region41
    $region40: #{tpu_custom_call.1} parent=1 // pred_region
      %69 = dma.done [#allocation7], 2048
    $region41: #{tpu_custom_call.1} parent=1 // pred_fallthru
      _
    %v70 = vld [vmem:[#allocation3] sm:$0xff]
    %v71 = vld [vmem:[#allocation3 + $0x8] sm:$0xff]
    %v72 = vld [vmem:[#allocation6] sm:$0xff]
    %v73 = vld [vmem:[#allocation6 + $0x8] sm:$0xff]
    %v74 = vld [vmem:[#allocation6 + $0x10] sm:$0xff]
    %v75 = vld [vmem:[#allocation6 + $0x18] sm:$0xff]
    %v76 = vld [vmem:[%s2] sm:$0x1]
    %v78 = vlaneseq
    %v79 = vshrl.u32 %v78, 7
    %v80 = vsub.s32 0, %v79
    %v81 = vrot.slane %v76, %v80
    %vm83 = vcmask 261120
    %v85 = vsel %vm83, %v70, 0
    %v88 = vsel %vm83, %v71, 0
    %90 = vmatprep.subr.mxu0 0.0
    %91 = vmatpush1.msra.mxu0 %v72
    %92 = vmatprep.subr.mxu0 0.0
    %93 = vmatpush1.msra.mxu0 %v73
    %94 = vmatprep.subr.mxu0 0.0
    %95 = vmatpush1.msra.mxu0 %v74
    %96 = vmatprep.subr.mxu0 0.0
    %97 = vmatpush1.msra.mxu0 %v75
    %98 = vmatprep.subr.mxu0 0.0
    %99 = vmatpush1.msra.mxu0 0.0
    %100 = vmatprep.subr.mxu0 0.0
    %101 = vmatpush1.msra.mxu0 0.0
    %102 = vmatprep.subr.mxu0 0.0
    %103 = vmatpush1.msra.mxu0 0.0
    %104 = vmatprep.subr.mxu0 0.0
    %105 = vmatpush1.msra.mxu0 0.0
    %106 = vmatprep.subr.mxu0 0.0
    %107 = vmatpush1.msra.mxu0 0.0
    %108 = vmatprep.subr.mxu0 0.0
    %109 = vmatpush1.msra.mxu0 0.0
    %110 = vmatprep.subr.mxu0 0.0
    %111 = vmatpush1.msra.mxu0 0.0
    %112 = vmatprep.subr.mxu0 0.0
    %113 = vmatpush1.msra.mxu0 0.0
    %114 = vmatprep.subr.mxu0 0.0
    %115 = vmatpush1.msra.mxu0 0.0
    %116 = vmatprep.subr.mxu0 0.0
    %117 = vmatpush1.msra.mxu0 0.0
    %118 = vmatprep.subr.mxu0 0.0
    %119 = vmatpush1.msra.mxu0 0.0
    %120 = vmatprep.subr.mxu0 0.0
    %121 = vmatpush1.msra.mxu0 0.0
    %122 = vmatprep.subr.mxu0 0.0
    %123 = vmatpush1.msra.mxu0 0.0
    %124 = vmatprep.subr.mxu0 0.0
    %125 = vmatpush1.msra.mxu0 0.0
    %126 = vmatprep.subr.mxu0 0.0
    %127 = vmatpush1.msra.mxu0 0.0
    %128 = vmatprep.subr.mxu0 0.0
    %129 = vmatpush1.msra.mxu0 0.0
    %130 = vmatprep.subr.mxu0 0.0
    %131 = vmatpush1.msra.mxu0 0.0
    %132 = vmatprep.subr.mxu0 0.0
    %133 = vmatpush1.msra.mxu0 0.0
    %134 = vmatprep.subr.mxu0 0.0
    %135 = vmatpush1.msra.mxu0 0.0
    %136 = vmatprep.subr.mxu0 0.0
    %137 = vmatpush1.msra.mxu0 0.0
    %138 = vmatprep.subr.mxu0 0.0
    %139 = vmatpush1.msra.mxu0 0.0
    %140 = vmatprep.subr.mxu0 0.0
    %141 = vmatpush1.msra.mxu0 0.0
    %142 = vmatprep.subr.mxu0 0.0
    %143 = vmatpush1.msra.mxu0 0.0
    %144 = vmatprep.subr.mxu0 0.0
    %145 = vmatpush1.msra.mxu0 0.0
    %146 = vmatprep.subr.mxu0 0.0
    %147 = vmatpush1.msra.mxu0 0.0
    %148 = vmatprep.subr.mxu0 0.0
    %149 = vmatpush1.msra.mxu0 0.0
    %150 = vmatprep.subr.mxu0 0.0
    %151 = vmatpush1.msra.mxu0 0.0
    %152 = vmatprep.subr.mxu0 0.0
    %153 = vmatpush1.msra.mxu0 0.0
    %154 = vmatprep.mubr.f32.mxu0 0.0
    %155 = vmatmul.mubr.f32.gmra.mrb[0].mxu0 %v85
    %v156 = vpop.f32.mrb[0].mxu0
    %v157 = vadd.f32 %v81, %v156
    %v158 = vpop.f32.mrb[0].mxu0
    %159 = vmatprep.mubr.f32.mxu0 0.0
    %160 = vmatmul.mubr.f32.gmra.mrb[0].mxu0 %v88
    %v161 = vpop.f32.mrb[0].mxu0
    %v162 = vadd.f32 %v81, %v161
    %v163 = vpop.f32.mrb[0].mxu0
    %164 = vdwg.mxu0
    %v165 = vmax.f32 %v157, 0.0
    %v166 = vmax.f32 %v162, 0.0
    %v167 = vld [vmem:[#allocation8] sm:$0xff]
    %v168 = vld [vmem:[#allocation8 + $0x8] sm:$0xff]
    %v169 = vld [vmem:[#allocation8 + $0x10] sm:$0xff]
    %v170 = vld [vmem:[#allocation8 + $0x18] sm:$0xff]
    %v171 = vld [vmem:[#allocation8 + $0x20] sm:$0xff]
    %v172 = vld [vmem:[#allocation8 + $0x28] sm:$0xff]
    %v173 = vld [vmem:[#allocation8 + $0x30] sm:$0xff]
    %v174 = vld [vmem:[#allocation8 + $0x38] sm:$0xff]
    %v175 = vld [vmem:[#allocation8 + $0x40] sm:$0xff]
    %v176 = vld [vmem:[#allocation8 + $0x48] sm:$0xff]
    %v177 = vld [vmem:[#allocation8 + $0x50] sm:$0xff]
    %v178 = vld [vmem:[#allocation8 + $0x58] sm:$0xff]
    %v179 = vld [vmem:[#allocation8 + $0x60] sm:$0xff]
    %v180 = vld [vmem:[#allocation8 + $0x68] sm:$0xff]
    %v181 = vld [vmem:[#allocation8 + $0x70] sm:$0xff]
    %v182 = vld [vmem:[#allocation8 + $0x78] sm:$0xff]
    %v183 = vld [vmem:[%s4] sm:$0x1]
    %v185 = vlaneseq
    %v186 = vshrl.u32 %v185, 7
    %v187 = vsub.s32 0, %v186
    %v188 = vrot.slane %v183, %v187
    %190 = vmatprep.subr.mxu0 0.0
    %191 = vmatpush1.msra.mxu0 %v167
    %192 = vmatprep.subr.mxu0 0.0
    %193 = vmatpush1.msra.mxu0 %v168
    %194 = vmatprep.subr.mxu0 0.0
    %195 = vmatpush1.msra.mxu0 %v169
    %196 = vmatprep.subr.mxu0 0.0
    %197 = vmatpush1.msra.mxu0 %v170
    %198 = vmatprep.subr.mxu0 0.0
    %199 = vmatpush1.msra.mxu0 %v171
    %200 = vmatprep.subr.mxu0 0.0
    %201 = vmatpush1.msra.mxu0 %v172
    %202 = vmatprep.subr.mxu0 0.0
    %203 = vmatpush1.msra.mxu0 %v173
    %204 = vmatprep.subr.mxu0 0.0
    %205 = vmatpush1.msra.mxu0 %v174
    %206 = vmatprep.subr.mxu0 0.0
    %207 = vmatpush1.msra.mxu0 %v175
    %208 = vmatprep.subr.mxu0 0.0
    %209 = vmatpush1.msra.mxu0 %v176
    %210 = vmatprep.subr.mxu0 0.0
    %211 = vmatpush1.msra.mxu0 %v177
    %212 = vmatprep.subr.mxu0 0.0
    %213 = vmatpush1.msra.mxu0 %v178
    %214 = vmatprep.subr.mxu0 0.0
    %215 = vmatpush1.msra.mxu0 %v179
    %216 = vmatprep.subr.mxu0 0.0
    %217 = vmatpush1.msra.mxu0 %v180
    %218 = vmatprep.subr.mxu0 0.0
    %219 = vmatpush1.msra.mxu0 %v181
    %220 = vmatprep.subr.mxu0 0.0
    %221 = vmatpush1.msra.mxu0 %v182
    %222 = vmatprep.subr.mxu0 0.0
    %223 = vmatpush1.msra.mxu0 0.0
    %224 = vmatprep.subr.mxu0 0.0
    %225 = vmatpush1.msra.mxu0 0.0
    %226 = vmatprep.subr.mxu0 0.0
    %227 = vmatpush1.msra.mxu0 0.0
    %228 = vmatprep.subr.mxu0 0.0
    %229 = vmatpush1.msra.mxu0 0.0
    %230 = vmatprep.subr.mxu0 0.0
    %231 = vmatpush1.msra.mxu0 0.0
    %232 = vmatprep.subr.mxu0 0.0
    %233 = vmatpush1.msra.mxu0 0.0
    %234 = vmatprep.subr.mxu0 0.0
    %235 = vmatpush1.msra.mxu0 0.0
    %236 = vmatprep.subr.mxu0 0.0
    %237 = vmatpush1.msra.mxu0 0.0
    %238 = vmatprep.subr.mxu0 0.0
    %239 = vmatpush1.msra.mxu0 0.0
    %240 = vmatprep.subr.mxu0 0.0
    %241 = vmatpush1.msra.mxu0 0.0
    %242 = vmatprep.subr.mxu0 0.0
    %243 = vmatpush1.msra.mxu0 0.0
    %244 = vmatprep.subr.mxu0 0.0
    %245 = vmatpush1.msra.mxu0 0.0
    %246 = vmatprep.subr.mxu0 0.0
    %247 = vmatpush1.msra.mxu0 0.0
    %248 = vmatprep.subr.mxu0 0.0
    %249 = vmatpush1.msra.mxu0 0.0
    %250 = vmatprep.subr.mxu0 0.0
    %251 = vmatpush1.msra.mxu0 0.0
    %252 = vmatprep.subr.mxu0 0.0
    %253 = vmatpush1.msra.mxu0 0.0
    %254 = vmatprep.mubr.f32.mxu0 0.0
    %255 = vmatmul.mubr.f32.gmra.mrb[0].mxu0 %v165
    %v256 = vpop.f32.mrb[0].mxu0
    %v257 = vadd.f32 %v188, %v256
    %v258 = vpop.f32.mrb[0].mxu0
    %259 = vmatprep.mubr.f32.mxu0 0.0
    %260 = vmatmul.mubr.f32.gmra.mrb[0].mxu0 %v166
    %v261 = vpop.f32.mrb[0].mxu0
    %v262 = vadd.f32 %v188, %v261
    %v263 = vpop.f32.mrb[0].mxu0
    %264 = vdwg.mxu0
    %v265 = vmax.f32 %v257, 0.0
    %v266 = vmax.f32 %v262, 0.0
    %v267 = vld [vmem:[%s5] sm:$0x1]
    %v268 = vld [vmem:[#allocation2] sm:$0x1]
    %270 = vset.pattern.permute.xlu0 0
    %271 = vperm.xlu0 %270, %v268
    %v272 = vpop.permute.xlu0 %271
    %v274 = vlaneseq
    %v275 = vshrl.u32 %v274, 7
    %v276 = vsub.s32 0, %v275
    %v277 = vrot.slane %v272, %v276
    %278 = vmatprep.subr.mxu0 0.0
    %279 = vmatpush1.xpose.msra.mxu0 %v265
    %280 = vmatprep.subr.mxu0 0.0
    %281 = vmatpush1.xpose.msra.mxu0 %v266
    %282 = vmatprep.subr.mxu0 0.0
    %283 = vmatpush1.xpose.msra.mxu0 0.0
    %284 = vmatprep.subr.mxu0 0.0
    %285 = vmatpush1.xpose.msra.mxu0 0.0
    %286 = vmatprep.subr.mxu0 0.0
    %287 = vmatpush1.xpose.msra.mxu0 0.0
    %288 = vmatprep.subr.mxu0 0.0
    %289 = vmatpush1.xpose.msra.mxu0 0.0
    %290 = vmatprep.subr.mxu0 0.0
    %291 = vmatpush1.xpose.msra.mxu0 0.0
    %292 = vmatprep.subr.mxu0 0.0
    %293 = vmatpush1.xpose.msra.mxu0 0.0
    %294 = vmatprep.subr.mxu0 0.0
    %295 = vmatpush1.xpose.msra.mxu0 0.0
    %296 = vmatprep.subr.mxu0 0.0
    %297 = vmatpush1.xpose.msra.mxu0 0.0
    %298 = vmatprep.subr.mxu0 0.0
    %299 = vmatpush1.xpose.msra.mxu0 0.0
    %300 = vmatprep.subr.mxu0 0.0
    %301 = vmatpush1.xpose.msra.mxu0 0.0
    %302 = vmatprep.subr.mxu0 0.0
    %303 = vmatpush1.xpose.msra.mxu0 0.0
    %304 = vmatprep.subr.mxu0 0.0
    %305 = vmatpush1.xpose.msra.mxu0 0.0
    %306 = vmatprep.subr.mxu0 0.0
    %307 = vmatpush1.xpose.msra.mxu0 0.0
    %308 = vmatprep.subr.mxu0 0.0
    %309 = vmatpush1.xpose.msra.mxu0 0.0
    %310 = vmatprep.subr.mxu0 0.0
    %311 = vmatpush1.xpose.msra.mxu0 0.0
    %312 = vmatprep.subr.mxu0 0.0
    %313 = vmatpush1.xpose.msra.mxu0 0.0
    %314 = vmatprep.subr.mxu0 0.0
    %315 = vmatpush1.xpose.msra.mxu0 0.0
    %316 = vmatprep.subr.mxu0 0.0
    %317 = vmatpush1.xpose.msra.mxu0 0.0
    %318 = vmatprep.subr.mxu0 0.0
    %319 = vmatpush1.xpose.msra.mxu0 0.0
    %320 = vmatprep.subr.mxu0 0.0
    %321 = vmatpush1.xpose.msra.mxu0 0.0
    %322 = vmatprep.subr.mxu0 0.0
    %323 = vmatpush1.xpose.msra.mxu0 0.0
    %324 = vmatprep.subr.mxu0 0.0
    %325 = vmatpush1.xpose.msra.mxu0 0.0
    %326 = vmatprep.subr.mxu0 0.0
    %327 = vmatpush1.xpose.msra.mxu0 0.0
    %328 = vmatprep.subr.mxu0 0.0
    %329 = vmatpush1.xpose.msra.mxu0 0.0
    %330 = vmatprep.subr.mxu0 0.0
    %331 = vmatpush1.xpose.msra.mxu0 0.0
    %332 = vmatprep.subr.mxu0 0.0
    %333 = vmatpush1.xpose.msra.mxu0 0.0
    %334 = vmatprep.subr.mxu0 0.0
    %335 = vmatpush1.xpose.msra.mxu0 0.0
    %336 = vmatprep.subr.mxu0 0.0
    %337 = vmatpush1.xpose.msra.mxu0 0.0
    %338 = vmatprep.subr.mxu0 0.0
    %339 = vmatpush1.xpose.msra.mxu0 0.0
    %340 = vmatprep.subr.mxu0 0.0
    %341 = vmatpush1.xpose.msra.mxu0 0.0
    %342 = vmatprep.mubr.f32.mxu0 0.0
    %343 = vmatmul.mubr.f32.gmra.mrb[0].mxu0 %v267
    %v344 = vpop.f32.mrb[0].mxu0
    %v345 = vadd.f32 %v277, %v344
    %v346 = vpop.f32.mrb[0].mxu0
    %347 = vdwg.mxu0
    %v348 = vxor.u32 %v345, 2147483648
    %v349 = vmul.f32 %v348, 1.442695
    %v350 = vpow.pop %v349
    %v351 = vadd.f32 %v350, 1.0
    %v352 = vrcp.pop %v351
    %v353 = vmul.f32 1.0, %v352
    %vm354 = vcmask 122880
    %355 = vst.msk [vmem:[#allocation9] sm:$0x1] %vm354, %v353
    // Predicated region
    $region42: #{tpu_custom_call.1} parent=1 // pred_check
      _
    $region43: #{tpu_custom_call.1} parent=1 // pred_check_branch
      %357 = sbr.rel (0) target = $region45
    $region44: #{tpu_custom_call.1} parent=1 // pred_region
      %s359 = ssub.s32 16, 16
      %360 = vsyncadd [#allocation5], %s359
      %s362 = sshll.u32 [#allocation9], 4
      %s363 = int_to_ptr.vmem [resolvable:$true] %s362
      %365 = dma.vmem_to_hbm [thread:$0]  %s363, 16, %s7, [#allocation5]
    $region45: #{tpu_custom_call.1} parent=1 // pred_fallthru
      _
    // Predicated region
    $region46: #{tpu_custom_call.1} parent=1 // pred_check
      _
    $region47: #{tpu_custom_call.1} parent=1 // pred_check_branch
      %367 = sbr.rel (0) target = $region49
    $region48: #{tpu_custom_call.1} parent=1 // pred_region
      %368 = dma.done [#allocation5], 16
    $region49: #{tpu_custom_call.1} parent=1 // pred_fallthru
      _
    %369 = vsyncpa [#allocation4], 1
    %370 = vsyncpa [#allocation7], 1
    %371 = vsyncpa [#allocation5], 1

</llo_original>
